<compile_context>
chip_gen: v7x
topology: tpu7x:2x2x1
jax: 0.10.0
libtpu: 0.0.40
codegen_flags: <defaults>
</compile_context>

<pallas_src>
import jax
import jax.numpy as jnp
from jax.experimental import pallas as pl
from jax.experimental.pallas import tpu as pltpu


# ------------------------------ kernels -------------------------------------

def _mm_bias_f32_kernel(x_ref, w_ref, b_ref, o_ref):
    # x: (tm, tk)  w: (tk, tn)  b: (1, tn) f32  o: (tm, tn) f32, resident over K
    @pl.when(pl.program_id(2) == 0)
    def _init():
        o_ref[...] = jnp.broadcast_to(b_ref[...], o_ref.shape)

    o_ref[...] += jnp.dot(x_ref[...], w_ref[...],
                          preferred_element_type=jnp.float32)


def _mm_f32_kernel(x_ref, w_ref, o_ref):
    @pl.when(pl.program_id(2) == 0)
    def _init():
        o_ref[...] = jnp.zeros_like(o_ref)

    o_ref[...] += jnp.dot(x_ref[...], w_ref[...],
                          preferred_element_type=jnp.float32)


def _mm_bias_acc_kernel(x_ref, w_ref, b_ref, o_ref, acc_ref):
    # Non-f32 output: keep an f32 VMEM accumulator, cast once at the last K step.
    @pl.when(pl.program_id(2) == 0)
    def _init():
        acc_ref[...] = jnp.broadcast_to(b_ref[...], acc_ref.shape)

    acc_ref[...] += jnp.dot(x_ref[...], w_ref[...],
                            preferred_element_type=jnp.float32)

    @pl.when(pl.program_id(2) == pl.num_programs(2) - 1)
    def _fin():
        o_ref[...] = acc_ref[...].astype(o_ref.dtype)


def _mm_acc_kernel(x_ref, w_ref, o_ref, acc_ref):
    @pl.when(pl.program_id(2) == 0)
    def _init():
        acc_ref[...] = jnp.zeros_like(acc_ref)

    acc_ref[...] += jnp.dot(x_ref[...], w_ref[...],
                            preferred_element_type=jnp.float32)

    @pl.when(pl.program_id(2) == pl.num_programs(2) - 1)
    def _fin():
        o_ref[...] = acc_ref[...].astype(o_ref.dtype)


# ------------------------------ helpers -------------------------------------

def _round_up(x, m):
    return ((x + m - 1) // m) * m


def _pick_tile(padded, unit, max_tile):
    """Largest multiple of `unit` that divides `padded` and is <= max_tile."""
    q = padded // unit
    best = 1
    d = 1
    while d * d <= q:
        if q % d == 0:
            if d * unit <= max_tile:
                best = max(best, d)
            e = q // d
            if e * unit <= max_tile:
                best = max(best, e)
        d += 1
    return best * unit


def prepare_slinear_weight(weight):
    """One-time prep of the bank-assembled (out, in) weight:
    transpose to MXU-native (K, N) and zero-pad both dims to multiples of 128."""
    n, k = weight.shape
    kp = _round_up(k, 128)
    npad = _round_up(n, 128)
    w_kn = weight.T
    if kp != k or npad != n:
        w_kn = jnp.pad(w_kn, ((0, kp - k), (0, npad - n)))
    return w_kn


def slinear_apply(x, w_kn, bias=None, *, in_features, out_features,
                  tm_max=512, tn_max=512, tk_max=1024):
    """y = x @ W^T + bias using the prepared (K_pad, N_pad) weight."""
    assert x.shape[-1] == in_features
    kp, npad = w_kn.shape

    lead = x.shape[:-1]
    m = 1
    for d in lead:
        m *= d
    x2d = x.reshape(m, in_features)

    # --- M tiling: pad to a multiple of 8, prefer a tm that divides it (no
    # --- extra pad copy of x); fall back to padding only for awkward M.
    mp = _round_up(max(m, 1), 8)
    tm = _pick_tile(mp, 8, tm_max)
    if mp > tm_max and tm < 128:
        tm = tm_max
        mp = _round_up(mp, tm)

    # --- N / K tiling: divisors of the already-128-padded sizes -> zero waste.
    tn = _pick_tile(npad, 128, tn_max)
    tk = _pick_tile(kp, 128, tk_max)

    # v7x megacore: ensure a parallel axis has >= 2 tiles when possible.
    if (mp // tm) == 1 and (npad // tn) == 1 and npad >= 256:
        tn = _pick_tile(npad, 128, npad // 2)

    pad_m = mp - m
    pad_k = kp - in_features
    if pad_m or pad_k:
        x2d = jnp.pad(x2d, ((0, pad_m), (0, pad_k)))

    grid = (mp // tm, npad // tn, kp // tk)
    out_dtype = x.dtype
    direct_f32 = (out_dtype == jnp.float32)

    x_spec = pl.BlockSpec((tm, tk), lambda i, j, k: (i, k))
    w_spec = pl.BlockSpec((tk, tn), lambda i, j, k: (k, j))
    b_spec = pl.BlockSpec((1, tn), lambda i, j, k: (0, j))
    o_spec = pl.BlockSpec((tm, tn), lambda i, j, k: (i, j))

    if bias is not None:
        b2d = bias.astype(jnp.float32).reshape(1, out_features)
        if npad != out_features:
            b2d = jnp.pad(b2d, ((0, 0), (0, npad - out_features)))
        kernel = _mm_bias_f32_kernel if direct_f32 else _mm_bias_acc_kernel
        in_specs = [x_spec, w_spec, b_spec]
        args = (x2d, w_kn, b2d)
    else:
        kernel = _mm_f32_kernel if direct_f32 else _mm_acc_kernel
        in_specs = [x_spec, w_spec]
        args = (x2d, w_kn)

    scratch = [] if direct_f32 else [pltpu.VMEM((tm, tn), jnp.float32)]

    y2d = pl.pallas_call(
        kernel,
        out_shape=jax.ShapeDtypeStruct((mp, npad), out_dtype),
        grid_spec=pltpu.PrefetchScalarGridSpec(
            num_scalar_prefetch=0,
            grid=grid,
            in_specs=in_specs,
            out_specs=o_spec,
            scratch_shapes=scratch,
        ),
        compiler_params=pltpu.CompilerParams(
            dimension_semantics=("parallel", "parallel", "arbitrary")),
    )(*args)

    y2d = y2d[:m, :out_features]
    return y2d.reshape(*lead, out_features)


def slinear_forward(x, weight, bias=None):
    """Convenience wrapper: SLinear.forward(x) = F.linear(x, W, bias).
    For repeated calls, hoist prepare_slinear_weight() out (W is static)."""
    out_features, in_features = weight.shape
    w_kn = prepare_slinear_weight(weight)
    return slinear_apply(x, w_kn, bias,
                         in_features=in_features, out_features=out_features)


# ------------------------------ demo / checks -------------------------------

if __name__ == "__main__":
    key = jax.random.PRNGKey(0)
    kx, kw, kx2, kw2, kx3, kw3 = jax.random.split(key, 6)

    # Small shapes implied by the module: a linear layer on (..., in_features).
    batch, seq = 2, 8
    in_features, out_features = 32, 16
    x = jax.random.normal(kx, (batch, seq, in_features), dtype=jnp.float32)
    # Deterministic stand-in for the bank-assembled weight (shape [out, in]).
    weight = (jax.random.normal(kw, (out_features, in_features),
                                dtype=jnp.float32)
              * (1.0 / jnp.sqrt(in_features)))
    bias = jnp.zeros((out_features,), dtype=jnp.float32)  # SLinear zero-inits bias

    y = jax.block_until_ready(slinear_forward(x, weight, bias))
    y_ref = jnp.einsum("bsk,nk->bsn", x, weight) + bias
    assert y.shape == (batch, seq, out_features)
    assert jnp.allclose(y, y_ref, atol=1e-5, rtol=1e-5)

    # bias=None path (module default), using the hoisted prepared weight.
    w_kn = prepare_slinear_weight(weight)
    y_nb = jax.block_until_ready(
        slinear_apply(x, w_kn, None,
                      in_features=in_features, out_features=out_features))
    assert jnp.allclose(y_nb, jnp.einsum("bsk,nk->bsn", x, weight),
                        atol=1e-5, rtol=1e-5)

    # Larger shape: multiple N tiles, K accumulation over 2 steps, no
    # over-padding of the 384-wide output (tn divides 384).
    B2, S2, K2, N2 = 4, 64, 2048, 384
    x2 = jax.random.normal(kx2, (B2, S2, K2), dtype=jnp.float32)
    w2 = (jax.random.normal(kw2, (N2, K2), dtype=jnp.float32)
          * (1.0 / jnp.sqrt(K2)))
    b2 = jnp.zeros((N2,), dtype=jnp.float32)
    w2_kn = prepare_slinear_weight(w2)
    y2 = jax.block_until_ready(
        slinear_apply(x2, w2_kn, b2, in_features=K2, out_features=N2))
    y2_ref = jnp.einsum("bsk,nk->bsn", x2, w2) + b2
    assert y2.shape == (B2, S2, N2)
    assert jnp.allclose(y2, y2_ref, atol=2e-4, rtol=2e-4)

    # Ragged dims: M/N/K all non-aligned (zero-padded K keeps the accumulation
    # exact; padded M rows / N cols are sliced off).
    B3, S3, K3, N3 = 2, 5, 100, 50
    x3 = jax.random.normal(kx3, (B3, S3, K3), dtype=jnp.float32)
    w3 = (jax.random.normal(kw3, (N3, K3), dtype=jnp.float32)
          * (1.0 / jnp.sqrt(K3)))
    y3 = jax.block_until_ready(slinear_forward(x3, w3, None))
    y3_ref = jnp.einsum("bsk,nk->bsn", x3, w3)
    assert y3.shape == (B3, S3, N3)
    assert jnp.allclose(y3, y3_ref, atol=1e-5, rtol=1e-5)

    print("KERNEL_OK")
</pallas_src>

<mosaic_0001>
module attributes {stable_mosaic.version = 11 : i64} {
  func.func @_mm_bias_f32_kernel(%arg0: i32, %arg1: i32, %arg2: i32, %arg3: memref<16x128xf32, #tpu.memory_space<vmem>>, %arg4: memref<128x128xf32, #tpu.memory_space<vmem>>, %arg5: memref<1x128xf32, #tpu.memory_space<vmem>>, %arg6: memref<16x128xf32, #tpu.memory_space<vmem>>) attributes {dimension_semantics = [#tpu.dimension_semantics<parallel>, #tpu.dimension_semantics<parallel>, #tpu.dimension_semantics<arbitrary>], iteration_bounds = array<i64: 1, 1, 1>, scalar_prefetch = 0 : i64, scratch_operands = 0 : i64, tpu.core_type = #tpu.core_type<tc>, window_params = [{transform_indices = @transform_0, window_bounds = array<i64: 16, 128>}, {transform_indices = @transform_1, window_bounds = array<i64: 128, 128>}, {transform_indices = @transform_2, window_bounds = array<i64: 1, 128>}, {transform_indices = @transform_3, window_bounds = array<i64: 16, 128>}]} {
    %c0_i32 = arith.constant 0 : i32
    %0 = arith.cmpi eq, %arg2, %c0_i32 : i32
    %1 = arith.extui %0 : i1 to i32
    %c0_i32_0 = arith.constant 0 : i32
    %2 = arith.cmpi ne, %1, %c0_i32_0 : i32
    scf.if %2 {
      %c0_8 = arith.constant 0 : index
      %c0_9 = arith.constant 0 : index
      %9 = vector.load %arg5[%c0_8, %c0_9] : memref<1x128xf32, #tpu.memory_space<vmem>>, vector<1x128xf32>
      %10 = vector.shape_cast %9 : vector<1x128xf32> to vector<1x128xf32>
      %11 = vector.broadcast %10 : vector<1x128xf32> to vector<16x128xf32>
      %c0_10 = arith.constant 0 : index
      %c0_11 = arith.constant 0 : index
      %12 = vector.load %arg6[%c0_10, %c0_11] : memref<16x128xf32, #tpu.memory_space<vmem>>, vector<16x128xf32>
      tpu.vector_store %arg6[%c0_10, %c0_11], %11 {strides = array<i32>} : memref<16x128xf32, #tpu.memory_space<vmem>>, vector<16x128xf32>,
    } else {
    }
    %c0 = arith.constant 0 : index
    %c0_1 = arith.constant 0 : index
    %3 = vector.load %arg6[%c0, %c0_1] : memref<16x128xf32, #tpu.memory_space<vmem>>, vector<16x128xf32>
    %c0_2 = arith.constant 0 : index
    %c0_3 = arith.constant 0 : index
    %4 = vector.load %arg3[%c0_2, %c0_3] : memref<16x128xf32, #tpu.memory_space<vmem>>, vector<16x128xf32>
    %c0_4 = arith.constant 0 : index
    %c0_5 = arith.constant 0 : index
    %5 = vector.load %arg4[%c0_4, %c0_5] : memref<128x128xf32, #tpu.memory_space<vmem>>, vector<128x128xf32>
    %cst = arith.constant dense<0.000000e+00> : vector<16x128xf32>
    %6 = tpu.matmul %4, %5, %cst {dimension_numbers = #tpu.dot_dimension_numbers<[1], [0], [0], [1], [0, 0, 1, 1], [], []>} : vector<16x128xf32>, vector<128x128xf32>, vector<16x128xf32> -> vector<16x128xf32>
    %7 = arith.addf %3, %6 : vector<16x128xf32>
    %c0_6 = arith.constant 0 : index
    %c0_7 = arith.constant 0 : index
    %8 = vector.load %arg6[%c0_6, %c0_7] : memref<16x128xf32, #tpu.memory_space<vmem>>, vector<16x128xf32>
    tpu.vector_store %arg6[%c0_6, %c0_7], %7 {strides = array<i32>} : memref<16x128xf32, #tpu.memory_space<vmem>>, vector<16x128xf32>,
    return
  }
  func.func @transform_0(%arg0: i32, %arg1: i32, %arg2: i32) -> (i32, i32) {
    %c0_i32 = arith.constant 0 : i32
    return %arg0, %arg2 : i32, i32
  }
  func.func @transform_1(%arg0: i32, %arg1: i32, %arg2: i32) -> (i32, i32) {
    %c0_i32 = arith.constant 0 : i32
    return %arg2, %arg1 : i32, i32
  }
  func.func @transform_2(%arg0: i32, %arg1: i32, %arg2: i32) -> (i32, i32) {
    %c0_i32 = arith.constant 0 : i32
    %c0_i32_0 = arith.constant 0 : i32
    return %c0_i32, %arg1 : i32, i32
  }
  func.func @transform_3(%arg0: i32, %arg1: i32, %arg2: i32) -> (i32, i32) {
    %c0_i32 = arith.constant 0 : i32
    return %arg0, %arg1 : i32, i32
  }
}

</mosaic_0001>

<llo_original>
// kernel: tpu_custom_call.1
$region0: #{tpu_custom_call.1}
  #allocation0 [shape = 'u32[]', space=smem, size = 0x4, offset = 0x4, fixed_abs, tag = 'smem constant byte address 0x4 - core index']
  #allocation1 [shape = 'u32[144,128]{1,0:T(1,128)}', space=vmem, size = 0x12000, scoped, tag = 'internal scratch']
  %s0 = inlined_call_operand.hbm [shape: f32[16,128], index: 0, kind: input, shape index: {}]
  %s1 = inlined_call_operand.hbm [shape: f32[128,128], index: 1, kind: input, shape index: {}]
  %s2 = inlined_call_operand.vmem [shape: f32[1,128], index: 2, kind: input, shape index: {}]
  %s3 = inlined_call_operand.hbm [shape: f32[16,128], index: 3, kind: output, shape index: {}]
  %s4 = sld [smem:[#allocation0]]
  $region34: #{tpu_custom_call.1} parent=0
    _
  %s6 = ssub.s32 1, %s4
  %s7 = scalar_select 0, %s6, %s4
  $region1: #{tpu_custom_call.1} parent=0
    #allocation2 [shape = 'u8[8192]{0}', space=vmem, size = 0x2000, scoped, tag = 'input window, operand 0, single buffered']
    #allocation3 [shape = 's32[1]{0}', space=sflag, size = 0x4, scoped, tag = 'scoped memory for tpu_custom_call.1']
    #allocation4 [shape = 's32[1]{0}', space=sflag, size = 0x4, scoped, tag = 'scoped memory for tpu_custom_call.1']
    #allocation5 [shape = 'u8[65536]{0}', space=vmem, size = 0x10000, scoped, tag = 'input window, operand 1, single buffered']
    #allocation6 [shape = 's32[1]{0}', space=sflag, size = 0x4, scoped, tag = 'scoped memory for tpu_custom_call.1']
    #allocation7 [shape = 'u8[8192]{0}', space=vmem, size = 0x2000, scoped, tag = 'output window, operand 0, single buffered']
    %8 = vsyncpa [#allocation3], 0
    %9 = vsyncpa [#allocation6], 0
    %10 = vsyncpa [#allocation4], 0
    // Predicated region
    $region2: #{tpu_custom_call.1} parent=1 // pred_check
      _
    $region3: #{tpu_custom_call.1} parent=1 // pred_check_branch
      %12 = sbr.rel (0) target = $region5
    $region4: #{tpu_custom_call.1} parent=1 // pred_region
      %s14 = ssub.s32 256, 256
      %15 = vsyncadd [#allocation3], %s14
      %s16 = sshll.u32 [#allocation2], 4
      %s17 = int_to_ptr.vmem [resolvable:$true] %s16
      %22 = dma.hbm_to_vmem [thread:$0]  %s0, 256, %s17, [#allocation3], 128, 128, 8
    $region5: #{tpu_custom_call.1} parent=1 // pred_fallthru
      _
    // Predicated region
    $region6: #{tpu_custom_call.1} parent=1 // pred_check
      _
    $region7: #{tpu_custom_call.1} parent=1 // pred_check_branch
      %24 = sbr.rel (0) target = $region9
    $region8: #{tpu_custom_call.1} parent=1 // pred_region
      %s26 = ssub.s32 2048, 2048
      %27 = vsyncadd [#allocation6], %s26
      %s28 = sshll.u32 [#allocation5], 4
      %s29 = int_to_ptr.vmem [resolvable:$true] %s28
      %34 = dma.hbm_to_vmem [thread:$0]  %s1, 2048, %s29, [#allocation6], 128, 128, 8
    $region9: #{tpu_custom_call.1} parent=1 // pred_fallthru
      _
    // Predicated region
    $region10: #{tpu_custom_call.1} parent=1 // pred_check
      _
    $region11: #{tpu_custom_call.1} parent=1 // pred_check_branch
      %36 = sbr.rel (0) target = $region13
    $region12: #{tpu_custom_call.1} parent=1 // pred_region
      _
    $region13: #{tpu_custom_call.1} parent=1 // pred_fallthru
      _
    // Predicated region
    $region14: #{tpu_custom_call.1} parent=1 // pred_check
      _
    $region15: #{tpu_custom_call.1} parent=1 // pred_check_branch
      %38 = sbr.rel (0) target = $region17
    $region16: #{tpu_custom_call.1} parent=1 // pred_region
      %39 = dma.done [#allocation3], 256
    $region17: #{tpu_custom_call.1} parent=1 // pred_fallthru
      _
    // Predicated region
    $region18: #{tpu_custom_call.1} parent=1 // pred_check
      _
    $region19: #{tpu_custom_call.1} parent=1 // pred_check_branch
      %41 = sbr.rel (0) target = $region21
    $region20: #{tpu_custom_call.1} parent=1 // pred_region
      %42 = dma.done [#allocation6], 2048
    $region21: #{tpu_custom_call.1} parent=1 // pred_fallthru
      _
    %p43 = scmp.eq.s32.totalorder 0, 0
    // Predicated region
    $region22: #{tpu_custom_call.1} parent=1 // pred_check
      %p44 = pneg %p43
    $region23: #{tpu_custom_call.1} parent=1 // pred_check_branch
      %46 = sbr.rel (%p44) target = $region25
    $region24: #{tpu_custom_call.1} parent=1 // pred_region
      %v47 = vld [vmem:[%s2] sm:$0x1]
      %v49 = vlaneseq
      %v50 = vshrl.u32 %v49, 7
      %v51 = vsub.s32 0, %v50
      %v52 = vrot.slane %v47, %v51
      %54 = vst [vmem:[#allocation7] sm:$0xff] %v52
      %55 = vst [vmem:[#allocation7 + $0x8] sm:$0xff] %v52
    $region25: #{tpu_custom_call.1} parent=1 // pred_fallthru
      _
    %v56 = vld [vmem:[#allocation7] sm:$0xff]
    %v57 = vld [vmem:[#allocation7 + $0x8] sm:$0xff]
    %v58 = vld [vmem:[#allocation2] sm:$0xff]
    %v59 = vld [vmem:[#allocation2 + $0x8] sm:$0xff]
    %v60 = vld [vmem:[#allocation5] sm:$0xff]
    %v61 = vld [vmem:[#allocation5 + $0x8] sm:$0xff]
    %v62 = vld [vmem:[#allocation5 + $0x10] sm:$0xff]
    %v63 = vld [vmem:[#allocation5 + $0x18] sm:$0xff]
    %v64 = vld [vmem:[#allocation5 + $0x20] sm:$0xff]
    %v65 = vld [vmem:[#allocation5 + $0x28] sm:$0xff]
    %v66 = vld [vmem:[#allocation5 + $0x30] sm:$0xff]
    %v67 = vld [vmem:[#allocation5 + $0x38] sm:$0xff]
    %v68 = vld [vmem:[#allocation5 + $0x40] sm:$0xff]
    %v69 = vld [vmem:[#allocation5 + $0x48] sm:$0xff]
    %v70 = vld [vmem:[#allocation5 + $0x50] sm:$0xff]
    %v71 = vld [vmem:[#allocation5 + $0x58] sm:$0xff]
    %v72 = vld [vmem:[#allocation5 + $0x60] sm:$0xff]
    %v73 = vld [vmem:[#allocation5 + $0x68] sm:$0xff]
    %v74 = vld [vmem:[#allocation5 + $0x70] sm:$0xff]
    %v75 = vld [vmem:[#allocation5 + $0x78] sm:$0xff]
    %76 = vmatprep.subr.mxu0 0.0
    %77 = vmatpush1.msra.mxu0 %v60
    %78 = vmatprep.subr.mxu0 0.0
    %79 = vmatpush1.msra.mxu0 %v61
    %80 = vmatprep.subr.mxu0 0.0
    %81 = vmatpush1.msra.mxu0 %v62
    %82 = vmatprep.subr.mxu0 0.0
    %83 = vmatpush1.msra.mxu0 %v63
    %84 = vmatprep.subr.mxu0 0.0
    %85 = vmatpush1.msra.mxu0 %v64
    %86 = vmatprep.subr.mxu0 0.0
    %87 = vmatpush1.msra.mxu0 %v65
    %88 = vmatprep.subr.mxu0 0.0
    %89 = vmatpush1.msra.mxu0 %v66
    %90 = vmatprep.subr.mxu0 0.0
    %91 = vmatpush1.msra.mxu0 %v67
    %92 = vmatprep.subr.mxu0 0.0
    %93 = vmatpush1.msra.mxu0 %v68
    %94 = vmatprep.subr.mxu0 0.0
    %95 = vmatpush1.msra.mxu0 %v69
    %96 = vmatprep.subr.mxu0 0.0
    %97 = vmatpush1.msra.mxu0 %v70
    %98 = vmatprep.subr.mxu0 0.0
    %99 = vmatpush1.msra.mxu0 %v71
    %100 = vmatprep.subr.mxu0 0.0
    %101 = vmatpush1.msra.mxu0 %v72
    %102 = vmatprep.subr.mxu0 0.0
    %103 = vmatpush1.msra.mxu0 %v73
    %104 = vmatprep.subr.mxu0 0.0
    %105 = vmatpush1.msra.mxu0 %v74
    %106 = vmatprep.subr.mxu0 0.0
    %107 = vmatpush1.msra.mxu0 %v75
    %108 = vmatprep.subr.mxu0 0.0
    %109 = vmatpush1.msra.mxu0 0.0
    %110 = vmatprep.subr.mxu0 0.0
    %111 = vmatpush1.msra.mxu0 0.0
    %112 = vmatprep.subr.mxu0 0.0
    %113 = vmatpush1.msra.mxu0 0.0
    %114 = vmatprep.subr.mxu0 0.0
    %115 = vmatpush1.msra.mxu0 0.0
    %116 = vmatprep.subr.mxu0 0.0
    %117 = vmatpush1.msra.mxu0 0.0
    %118 = vmatprep.subr.mxu0 0.0
    %119 = vmatpush1.msra.mxu0 0.0
    %120 = vmatprep.subr.mxu0 0.0
    %121 = vmatpush1.msra.mxu0 0.0
    %122 = vmatprep.subr.mxu0 0.0
    %123 = vmatpush1.msra.mxu0 0.0
    %124 = vmatprep.subr.mxu0 0.0
    %125 = vmatpush1.msra.mxu0 0.0
    %126 = vmatprep.subr.mxu0 0.0
    %127 = vmatpush1.msra.mxu0 0.0
    %128 = vmatprep.subr.mxu0 0.0
    %129 = vmatpush1.msra.mxu0 0.0
    %130 = vmatprep.subr.mxu0 0.0
    %131 = vmatpush1.msra.mxu0 0.0
    %132 = vmatprep.subr.mxu0 0.0
    %133 = vmatpush1.msra.mxu0 0.0
    %134 = vmatprep.subr.mxu0 0.0
    %135 = vmatpush1.msra.mxu0 0.0
    %136 = vmatprep.subr.mxu0 0.0
    %137 = vmatpush1.msra.mxu0 0.0
    %138 = vmatprep.subr.mxu0 0.0
    %139 = vmatpush1.msra.mxu0 0.0
    %140 = vmatprep.mubr.f32.mxu0 0.0
    %141 = vmatmul.mubr.f32.gmra.mrb[0].mxu0 %v58
    %v142 = vpop.f32.mrb[0].mxu0
    %v143 = vadd.f32 0.0, %v142
    %v144 = vpop.f32.mrb[0].mxu0
    %145 = vmatprep.mubr.f32.mxu0 0.0
    %146 = vmatmul.mubr.f32.gmra.mrb[0].mxu0 %v59
    %v147 = vpop.f32.mrb[0].mxu0
    %v148 = vadd.f32 0.0, %v147
    %v149 = vpop.f32.mrb[0].mxu0
    %150 = vdwg.mxu0
    %v151 = vadd.f32 %v56, %v143
    %v152 = vadd.f32 %v57, %v148
    %153 = vst [vmem:[#allocation7] sm:$0xff] %v151
    %154 = vst [vmem:[#allocation7 + $0x8] sm:$0xff] %v152
    // Predicated region
    $region26: #{tpu_custom_call.1} parent=1 // pred_check
      _
    $region27: #{tpu_custom_call.1} parent=1 // pred_check_branch
      %156 = sbr.rel (0) target = $region29
    $region28: #{tpu_custom_call.1} parent=1 // pred_region
      %s158 = ssub.s32 256, 256
      %159 = vsyncadd [#allocation4], %s158
      %s160 = sshll.u32 [#allocation7], 4
      %s161 = int_to_ptr.vmem [resolvable:$true] %s160
      %166 = dma.vmem_to_hbm [thread:$0]  %s161, 256, %s3, [#allocation4], 128, 128, 8
    $region29: #{tpu_custom_call.1} parent=1 // pred_fallthru
      _
    // Predicated region
    $region30: #{tpu_custom_call.1} parent=1 // pred_check
      _
    $region31: #{tpu_custom_call.1} parent=1 // pred_check_branch
      %168 = sbr.rel (0) target = $region33
    $region32: #{tpu_custom_call.1} parent=1 // pred_region
      %169 = dma.done [#allocation4], 256
    $region33: #{tpu_custom_call.1} parent=1 // pred_fallthru
      _
    %170 = vsyncpa [#allocation3], 1
    %171 = vsyncpa [#allocation6], 1
    %172 = vsyncpa [#allocation4], 1

</llo_original>
